<compile_context>
chip_gen: v7x
topology: tpu7x:2x2x1
jax: 0.10.0
libtpu: 0.0.40
codegen_flags: <defaults>
</compile_context>

<pallas_src>
import jax
import jax.numpy as jnp
from jax import lax
from jax.experimental import pallas as pl
from jax.experimental.pallas import tpu as pltpu


def critic_kernel(obs_ref, w1_ref, b1_ref, w2_ref, b2_ref, w3_ref, b3_ref, out_ref):
    x = obs_ref[...]                                            # (tb, obs_dim) bf16/f32

    # h1^T = relu(W1 @ x^T + b1): batch stays on the 128-lane axis, no explicit
    # transpose of the obs tile (contraction on dim 1 of both operands = trans_b).
    # TODO(synk): inspect pl.lower_as_mlir for a materialized obs-tile transpose on
    # older Mosaic; if present, switch to an explicit pltpu.einshape on the XLU slot.
    h1 = lax.dot_general(w1_ref[...], x,                        # (64, tb) f32 acc
                         dimension_numbers=(((1,), (1,)), ((), ())),
                         preferred_element_type=jnp.float32)
    h1 = jnp.maximum(h1 + b1_ref[...], 0.0)                     # (64, tb) f32

    h2 = jnp.dot(w2_ref[...], h1.astype(w2_ref.dtype),          # (64, tb) f32 acc
                 preferred_element_type=jnp.float32)
    h2 = jnp.maximum(h2 + b2_ref[...], 0.0)                     # (64, tb) f32

    # Linear(64 -> 1): VPU broadcast-multiply + sublane reduction instead of a
    # 1-row MXU matmul (which wastes a full systolic pass).
    out = jnp.sum(w3_ref[...] * h2, axis=0, keepdims=True) + b3_ref[...]   # (1, tb)
    out_ref[...] = out.astype(out_ref.dtype)                    # lane-dense store


def _default_block_b(B, obs_itemsize):
    """VMEM-budget-derived batch block size.

    Per-row VMEM bytes (the (block_b, obs_dim) obs tile is padded to 128 lanes):
      obs window, double-buffered:    2 * 128 * itemsize
      h1 (f32) + recast for matmul2:  64*4 + 64*itemsize
      h2 (f32) + w3*h2 product (f32): 64*4 + 64*4
      (1, block_b) f32 out window:    2 * 8 * 4   (8-sublane tile, double-buffered)
    Budget ~20 MiB -> fits comfortably inside a 32 MiB scoped-VMEM limit on every
    generation (v5e/v6e 128 MiB physical, v7x 64 MiB physical / 32 MiB default).
    """
    LANES, H, F32 = 128, 64, 4
    per_row = (2 * LANES * obs_itemsize
               + H * F32 + H * obs_itemsize
               + H * F32 + H * F32
               + 2 * 8 * F32)
    budget = 20 * 1024 * 1024
    cap = max(128, (budget // per_row) // 128 * 128)
    if B <= 256:
        # Tiny problem: one block (block dim == array dim satisfies the (8,128) rule).
        return B
    # At least 2 lane-aligned grid steps so both v7x TensorCores get work.
    two_way = pl.cdiv(pl.cdiv(B, 2), 128) * 128
    return min(cap, two_way)


def critic_forward(obs, params, *, block_b=None, compute_dtype=jnp.bfloat16):
    """Critic forward pass with a fused Pallas kernel.

    obs:    (B, obs_dim) float32
    params: PyTorch-layout weights: w1 (64, obs_dim), b1 (64, 1), w2 (64, 64),
            b2 (64, 1), w3 (1, 64), b3 (1, 1)
    returns (B, 1) float32
    """
    B, obs_dim = obs.shape
    h = params["w1"].shape[0]                 # 64

    # bf16 inputs halve HBM traffic (kernel is HBM-bound); accumulation, biases
    # and the final 64->1 layer stay f32.
    x = obs.astype(compute_dtype)
    w1 = params["w1"].astype(compute_dtype)
    w2 = params["w2"].astype(compute_dtype)
    w3 = params["w3"].reshape(h, 1).astype(jnp.float32)   # column for the VPU reduce
    b1 = params["b1"].astype(jnp.float32)
    b2 = params["b2"].astype(jnp.float32)
    b3 = params["b3"].astype(jnp.float32)

    if block_b is None:
        block_b = _default_block_b(B, jnp.dtype(compute_dtype).itemsize)
    grid = (pl.cdiv(B, block_b),)

    out_t = pl.pallas_call(
        critic_kernel,
        out_shape=jax.ShapeDtypeStruct((1, B), jnp.float32),
        grid_spec=pltpu.PrefetchScalarGridSpec(
            num_scalar_prefetch=0,
            grid=grid,
            in_specs=[
                # obs: streamed / double-buffered over the batch axis
                pl.BlockSpec((block_b, obs_dim), lambda i: (i, 0)),
                # parameters: full blocks, resident across all grid steps
                pl.BlockSpec((h, obs_dim), lambda i: (0, 0)),   # w1
                pl.BlockSpec((h, 1), lambda i: (0, 0)),         # b1
                pl.BlockSpec((h, h), lambda i: (0, 0)),         # w2
                pl.BlockSpec((h, 1), lambda i: (0, 0)),         # b2
                pl.BlockSpec((h, 1), lambda i: (0, 0)),         # w3 (as column)
                pl.BlockSpec((1, 1), lambda i: (0, 0)),         # b3
            ],
            # lane-dense output: batch on the 128-lane axis
            out_specs=pl.BlockSpec((1, block_b), lambda i: (0, i)),
        ),
        compiler_params=pltpu.CompilerParams(
            dimension_semantics=("parallel",),
            vmem_limit_bytes=32 * 1024 * 1024,
        ),
    )(x, w1, b1, w2, b2, w3, b3)

    # (1, B) -> (B, 1): same memory order, free reshape in the wrapper.
    return out_t.reshape(B, 1)


def init_critic_params(key, obs_dim, hidden=64):
    """Deterministic init mimicking PyTorch nn.Linear default
    (uniform(-1/sqrt(fan_in), 1/sqrt(fan_in))), stored in PyTorch (out, in) layout."""
    ks = jax.random.split(key, 6)

    def linear(kw, kb, fan_in, fan_out):
        bound = 1.0 / jnp.sqrt(jnp.float32(fan_in))
        w = jax.random.uniform(kw, (fan_out, fan_in), jnp.float32, -bound, bound)
        b = jax.random.uniform(kb, (fan_out, 1), jnp.float32, -bound, bound)
        return w, b

    w1, b1 = linear(ks[0], ks[1], obs_dim, hidden)
    w2, b2 = linear(ks[2], ks[3], hidden, hidden)
    w3, b3 = linear(ks[4], ks[5], hidden, 1)
    return dict(w1=w1, b1=b1, w2=w2, b2=b2, w3=w3, b3=b3)


def critic_ref(obs, p, compute_dtype=jnp.float32):
    """Pure-JAX reference (PyTorch semantics: y = x @ W^T + b).

    With compute_dtype=bf16 it mirrors the kernel's rounding (bf16 inputs,
    f32 accumulation, bf16 re-cast of h1, f32 final layer)."""
    hp = jax.lax.Precision.HIGHEST
    cd = lambda a: a.astype(compute_dtype).astype(jnp.float32)
    h1 = jnp.maximum(jnp.dot(cd(obs), cd(p["w1"]).T, precision=hp) + p["b1"].T, 0.0)
    h2 = jnp.maximum(jnp.dot(cd(h1), cd(p["w2"]).T, precision=hp) + p["b2"].T, 0.0)
    return jnp.dot(h2, p["w3"].T, precision=hp) + p["b3"].T


if __name__ == "__main__":
    key = jax.random.PRNGKey(0)
    k_obs, k_par, k_obs2 = jax.random.split(key, 3)

    obs_dim = 32
    params = init_critic_params(k_par, obs_dim)

    # Small batch: single block (block shape == array shape).
    obs = jax.random.normal(k_obs, (8, obs_dim), jnp.float32)
    out = jax.block_until_ready(critic_forward(obs, params))
    assert out.shape == (8, 1)
    # Tight check vs. a reference that mirrors the kernel's bf16 rounding.
    ref_b = critic_ref(obs, params, compute_dtype=jnp.bfloat16)
    assert jnp.allclose(out, ref_b, atol=5e-3, rtol=5e-3)
    # Loose check vs. the pure-f32 reference (bf16 inputs -> ~0.5% error budget).
    assert jnp.allclose(out, critic_ref(obs, params), atol=3e-2, rtol=3e-2)

    # f32 path: exact semantics of the PyTorch module.
    out_f32 = jax.block_until_ready(
        critic_forward(obs, params, compute_dtype=jnp.float32))
    assert jnp.allclose(out_f32, critic_ref(obs, params), atol=1e-4, rtol=1e-4)

    # Larger, ragged batch: 2 grid steps of 512 lane-aligned rows, last block
    # partially out of range -> checks boundary clipping of the (1, B) output,
    # the pipelined obs DMA and the lane-dense store path.
    obs2 = jax.random.normal(k_obs2, (1000, obs_dim), jnp.float32)
    out2 = jax.block_until_ready(critic_forward(obs2, params))
    assert out2.shape == (1000, 1)
    ref2 = critic_ref(obs2, params, compute_dtype=jnp.bfloat16)
    assert jnp.allclose(out2, ref2, atol=5e-3, rtol=5e-3)
    assert jnp.allclose(out2, critic_ref(obs2, params), atol=3e-2, rtol=3e-2)

    print("KERNEL_OK")
</pallas_src>

<mosaic_0001>
module attributes {stable_mosaic.version = 11 : i64} {
  func.func @critic_kernel(%arg0: i32, %arg1: memref<8x32xbf16, #tpu.memory_space<vmem>>, %arg2: memref<64x32xbf16, #tpu.memory_space<vmem>>, %arg3: memref<64x1xf32, #tpu.memory_space<vmem>>, %arg4: memref<64x64xbf16, #tpu.memory_space<vmem>>, %arg5: memref<64x1xf32, #tpu.memory_space<vmem>>, %arg6: memref<64x1xf32, #tpu.memory_space<vmem>>, %arg7: memref<1x1xf32, #tpu.memory_space<vmem>>, %arg8: memref<1x8xf32, #tpu.memory_space<vmem>>) attributes {dimension_semantics = [#tpu.dimension_semantics<parallel>], iteration_bounds = array<i64: 1>, scalar_prefetch = 0 : i64, scratch_operands = 0 : i64, tpu.core_type = #tpu.core_type<tc>, window_params = [{transform_indices = @transform_0, window_bounds = array<i64: 8, 32>}, {pipeline_mode = #tpu.pipeline_mode<synchronous>, transform_indices = @transform_1, window_bounds = array<i64: 64, 32>}, {pipeline_mode = #tpu.pipeline_mode<synchronous>, transform_indices = @transform_2, window_bounds = array<i64: 64, 1>}, {pipeline_mode = #tpu.pipeline_mode<synchronous>, transform_indices = @transform_3, window_bounds = array<i64: 64, 64>}, {pipeline_mode = #tpu.pipeline_mode<synchronous>, transform_indices = @transform_4, window_bounds = array<i64: 64, 1>}, {pipeline_mode = #tpu.pipeline_mode<synchronous>, transform_indices = @transform_5, window_bounds = array<i64: 64, 1>}, {pipeline_mode = #tpu.pipeline_mode<synchronous>, transform_indices = @transform_6, window_bounds = array<i64: 1, 1>}, {transform_indices = @transform_7, window_bounds = array<i64: 1, 8>}]} {
    %c0 = arith.constant 0 : index
    %c0_0 = arith.constant 0 : index
    %0 = vector.load %arg1[%c0, %c0_0] : memref<8x32xbf16, #tpu.memory_space<vmem>>, vector<8x32xbf16>
    %c0_1 = arith.constant 0 : index
    %c0_2 = arith.constant 0 : index
    %1 = vector.load %arg2[%c0_1, %c0_2] : memref<64x32xbf16, #tpu.memory_space<vmem>>, vector<64x32xbf16>
    %cst = arith.constant dense<0.000000e+00> : vector<64x8xf32>
    %2 = tpu.matmul %1, %0, %cst {dimension_numbers = #tpu.dot_dimension_numbers<[1], [1], [0], [0], [0, 0, 1, 0], [], []>} : vector<64x32xbf16>, vector<8x32xbf16>, vector<64x8xf32> -> vector<64x8xf32>
    %c0_3 = arith.constant 0 : index
    %c0_4 = arith.constant 0 : index
    %3 = vector.load %arg3[%c0_3, %c0_4] : memref<64x1xf32, #tpu.memory_space<vmem>>, vector<64x1xf32>
    %4 = vector.broadcast %3 : vector<64x1xf32> to vector<64x8xf32>
    %5 = arith.addf %2, %4 : vector<64x8xf32>
    %cst_5 = arith.constant 0.000000e+00 : f32
    %6 = vector.broadcast %cst_5 : f32 to vector<64x8xf32>
    %7 = arith.maximumf %5, %6 : vector<64x8xf32>
    %c0_6 = arith.constant 0 : index
    %c0_7 = arith.constant 0 : index
    %8 = vector.load %arg4[%c0_6, %c0_7] : memref<64x64xbf16, #tpu.memory_space<vmem>>, vector<64x64xbf16>
    %9 = arith.truncf %7 : vector<64x8xf32> to vector<64x8xbf16>
    %cst_8 = arith.constant dense<0.000000e+00> : vector<64x8xf32>
    %10 = tpu.matmul %8, %9, %cst_8 {dimension_numbers = #tpu.dot_dimension_numbers<[1], [0], [0], [1], [0, 0, 1, 1], [], []>} : vector<64x64xbf16>, vector<64x8xbf16>, vector<64x8xf32> -> vector<64x8xf32>
    %c0_9 = arith.constant 0 : index
    %c0_10 = arith.constant 0 : index
    %11 = vector.load %arg5[%c0_9, %c0_10] : memref<64x1xf32, #tpu.memory_space<vmem>>, vector<64x1xf32>
    %12 = vector.broadcast %11 : vector<64x1xf32> to vector<64x8xf32>
    %13 = arith.addf %10, %12 : vector<64x8xf32>
    %cst_11 = arith.constant 0.000000e+00 : f32
    %14 = vector.broadcast %cst_11 : f32 to vector<64x8xf32>
    %15 = arith.maximumf %13, %14 : vector<64x8xf32>
    %c0_12 = arith.constant 0 : index
    %c0_13 = arith.constant 0 : index
    %16 = vector.load %arg6[%c0_12, %c0_13] : memref<64x1xf32, #tpu.memory_space<vmem>>, vector<64x1xf32>
    %17 = vector.broadcast %16 : vector<64x1xf32> to vector<64x8xf32>
    %18 = arith.mulf %17, %15 : vector<64x8xf32>
    %cst_14 = arith.constant dense<0.000000e+00> : vector<8xf32>
    %19 = vector.multi_reduction <add>, %18, %cst_14 [0] : vector<64x8xf32> to vector<8xf32>
    %20 = vector.shape_cast %19 : vector<8xf32> to vector<1x8xf32>
    %c0_15 = arith.constant 0 : index
    %c0_16 = arith.constant 0 : index
    %21 = vector.load %arg7[%c0_15, %c0_16] : memref<1x1xf32, #tpu.memory_space<vmem>>, vector<1x1xf32>
    %22 = vector.broadcast %21 : vector<1x1xf32> to vector<1x8xf32>
    %23 = arith.addf %20, %22 : vector<1x8xf32>
    %c0_17 = arith.constant 0 : index
    %c0_18 = arith.constant 0 : index
    %24 = vector.load %arg8[%c0_17, %c0_18] : memref<1x8xf32, #tpu.memory_space<vmem>>, vector<1x8xf32>
    tpu.vector_store %arg8[%c0_17, %c0_18], %23 {strides = array<i32>} : memref<1x8xf32, #tpu.memory_space<vmem>>, vector<1x8xf32>,
    return
  }
  func.func @transform_0(%arg0: i32) -> (i32, i32) {
    %c0_i32 = arith.constant 0 : i32
    %c0_i32_0 = arith.constant 0 : i32
    return %arg0, %c0_i32 : i32, i32
  }
  func.func @transform_1(%arg0: i32) -> (i32, i32) {
    %c0_i32 = arith.constant 0 : i32
    %c0_i32_0 = arith.constant 0 : i32
    %c0_i32_1 = arith.constant 0 : i32
    return %c0_i32, %c0_i32_0 : i32, i32
  }
  func.func @transform_2(%arg0: i32) -> (i32, i32) {
    %c0_i32 = arith.constant 0 : i32
    %c0_i32_0 = arith.constant 0 : i32
    %c0_i32_1 = arith.constant 0 : i32
    return %c0_i32, %c0_i32_0 : i32, i32
  }
  func.func @transform_3(%arg0: i32) -> (i32, i32) {
    %c0_i32 = arith.constant 0 : i32
    %c0_i32_0 = arith.constant 0 : i32
    %c0_i32_1 = arith.constant 0 : i32
    return %c0_i32, %c0_i32_0 : i32, i32
  }
  func.func @transform_4(%arg0: i32) -> (i32, i32) {
    %c0_i32 = arith.constant 0 : i32
    %c0_i32_0 = arith.constant 0 : i32
    %c0_i32_1 = arith.constant 0 : i32
    return %c0_i32, %c0_i32_0 : i32, i32
  }
  func.func @transform_5(%arg0: i32) -> (i32, i32) {
    %c0_i32 = arith.constant 0 : i32
    %c0_i32_0 = arith.constant 0 : i32
    %c0_i32_1 = arith.constant 0 : i32
    return %c0_i32, %c0_i32_0 : i32, i32
  }
  func.func @transform_6(%arg0: i32) -> (i32, i32) {
    %c0_i32 = arith.constant 0 : i32
    %c0_i32_0 = arith.constant 0 : i32
    %c0_i32_1 = arith.constant 0 : i32
    return %c0_i32, %c0_i32_0 : i32, i32
  }
  func.func @transform_7(%arg0: i32) -> (i32, i32) {
    %c0_i32 = arith.constant 0 : i32
    %c0_i32_0 = arith.constant 0 : i32
    return %c0_i32, %arg0 : i32, i32
  }
}

</mosaic_0001>

<llo_original>
// kernel: tpu_custom_call.1
$region0: #{tpu_custom_call.1}
  #allocation0 [shape = 'u32[]', space=smem, size = 0x4, offset = 0x4, fixed_abs, tag = 'smem constant byte address 0x4 - core index']
  #allocation1 [shape = 'u32[144,128]{1,0:T(1,128)}', space=vmem, size = 0x12000, scoped, tag = 'internal scratch']
  #allocation2 [shape = 'f32[1,1]{1,0:T(1,128)S(1)}', space=vmem, size = 0x200, scoped, tag = 'scoped memory for tpu_custom_call.1']
  %s0 = inlined_call_operand.vmem [shape: bf16[8,32], index: 0, kind: input, shape index: {}]
  %s1 = inlined_call_operand.vmem [shape: bf16[64,32], index: 1, kind: input, shape index: {}]
  %s2 = inlined_call_operand.vmem [shape: f32[64,1], index: 2, kind: input, shape index: {}]
  %s3 = inlined_call_operand.vmem [shape: bf16[64,64], index: 3, kind: input, shape index: {}]
  %s4 = inlined_call_operand.vmem [shape: f32[64,1], index: 4, kind: input, shape index: {}]
  %s5 = inlined_call_operand.vmem [shape: f32[64,1], index: 5, kind: input, shape index: {}]
  %s6 = inlined_call_operand.<no memory space> [shape: f32[1,1], index: 6, kind: input, shape index: {}]
  %s7 = inlined_call_operand.hbm [shape: f32[1,8], index: 7, kind: output, shape index: {}]
  %s8 = sld [smem:[#allocation0]]
  $region38: #{tpu_custom_call.1} parent=0
    _
  %s10 = ssub.s32 1, %s8
  %s11 = scalar_select 0, %s10, %s8
  %v12 = vstv %s6
  %13 = vst [vmem:[#allocation2] sm:$0x1] %v12
  $region1: #{tpu_custom_call.1} parent=0
    #allocation3 [shape = 'u8[512]{0}', space=vmem, size = 0x400, scoped, tag = 'output window, operand 0, single buffered']
    #allocation4 [shape = 's32[1]{0}', space=sflag, size = 0x4, scoped, tag = 'scoped memory for tpu_custom_call.1']
    %14 = vsyncpa [#allocation4], 0
    // Predicated region
    $region2: #{tpu_custom_call.1} parent=1 // pred_check
      _
    $region3: #{tpu_custom_call.1} parent=1 // pred_check_branch
      %16 = sbr.rel (0) target = $region5
    $region4: #{tpu_custom_call.1} parent=1 // pred_region
      _
    $region5: #{tpu_custom_call.1} parent=1 // pred_fallthru
      _
    // Predicated region
    $region6: #{tpu_custom_call.1} parent=1 // pred_check
      _
    $region7: #{tpu_custom_call.1} parent=1 // pred_check_branch
      %18 = sbr.rel (0) target = $region9
    $region8: #{tpu_custom_call.1} parent=1 // pred_region
      _
    $region9: #{tpu_custom_call.1} parent=1 // pred_fallthru
      _
    // Predicated region
    $region10: #{tpu_custom_call.1} parent=1 // pred_check
      _
    $region11: #{tpu_custom_call.1} parent=1 // pred_check_branch
      %20 = sbr.rel (0) target = $region13
    $region12: #{tpu_custom_call.1} parent=1 // pred_region
      _
    $region13: #{tpu_custom_call.1} parent=1 // pred_fallthru
      _
    // Predicated region
    $region14: #{tpu_custom_call.1} parent=1 // pred_check
      _
    $region15: #{tpu_custom_call.1} parent=1 // pred_check_branch
      %22 = sbr.rel (0) target = $region17
    $region16: #{tpu_custom_call.1} parent=1 // pred_region
      _
    $region17: #{tpu_custom_call.1} parent=1 // pred_fallthru
      _
    // Predicated region
    $region18: #{tpu_custom_call.1} parent=1 // pred_check
      _
    $region19: #{tpu_custom_call.1} parent=1 // pred_check_branch
      %24 = sbr.rel (0) target = $region21
    $region20: #{tpu_custom_call.1} parent=1 // pred_region
      _
    $region21: #{tpu_custom_call.1} parent=1 // pred_fallthru
      _
    // Predicated region
    $region22: #{tpu_custom_call.1} parent=1 // pred_check
      _
    $region23: #{tpu_custom_call.1} parent=1 // pred_check_branch
      %26 = sbr.rel (0) target = $region25
    $region24: #{tpu_custom_call.1} parent=1 // pred_region
      _
    $region25: #{tpu_custom_call.1} parent=1 // pred_fallthru
      _
    // Predicated region
    $region26: #{tpu_custom_call.1} parent=1 // pred_check
      _
    $region27: #{tpu_custom_call.1} parent=1 // pred_check_branch
      %28 = sbr.rel (0) target = $region29
    $region28: #{tpu_custom_call.1} parent=1 // pred_region
      _
    $region29: #{tpu_custom_call.1} parent=1 // pred_fallthru
      _
    %v30 = vld [vmem:[%s0] sm:$0xf]
    %v31 = vld [vmem:[%s1] sm:$0xf]
    %v32 = vld [vmem:[%s1 + $0x4] sm:$0xf]
    %v33 = vld [vmem:[%s1 + $0x8] sm:$0xf]
    %v34 = vld [vmem:[%s1 + $0xc] sm:$0xf]
    %v35 = vld [vmem:[%s1 + $0x10] sm:$0xf]
    %v36 = vld [vmem:[%s1 + $0x14] sm:$0xf]
    %v37 = vld [vmem:[%s1 + $0x18] sm:$0xf]
    %v38 = vld [vmem:[%s1 + $0x1c] sm:$0xf]
    %v39 = vld [vmem:[%s2] sm:$0xff]
    %v40 = vld [vmem:[%s2 + $0x8] sm:$0xff]
    %v41 = vld [vmem:[%s2 + $0x10] sm:$0xff]
    %v42 = vld [vmem:[%s2 + $0x18] sm:$0xff]
    %v43 = vld [vmem:[%s2 + $0x20] sm:$0xff]
    %v44 = vld [vmem:[%s2 + $0x28] sm:$0xff]
    %v45 = vld [vmem:[%s2 + $0x30] sm:$0xff]
    %v46 = vld [vmem:[%s2 + $0x38] sm:$0xff]
    %48 = vset.pattern.permute.xlu0 0
    %49 = vperm.xlu0 %48, %v39
    %v50 = vpop.permute.xlu0 %49
    %53 = vset.pattern.permute.xlu0 0
    %54 = vperm.xlu0 %53, %v40
    %v55 = vpop.permute.xlu0 %54
    %58 = vset.pattern.permute.xlu0 0
    %59 = vperm.xlu0 %58, %v41
    %v60 = vpop.permute.xlu0 %59
    %63 = vset.pattern.permute.xlu0 0
    %64 = vperm.xlu0 %63, %v42
    %v65 = vpop.permute.xlu0 %64
    %68 = vset.pattern.permute.xlu0 0
    %69 = vperm.xlu0 %68, %v43
    %v70 = vpop.permute.xlu0 %69
    %73 = vset.pattern.permute.xlu0 0
    %74 = vperm.xlu0 %73, %v44
    %v75 = vpop.permute.xlu0 %74
    %78 = vset.pattern.permute.xlu0 0
    %79 = vperm.xlu0 %78, %v45
    %v80 = vpop.permute.xlu0 %79
    %83 = vset.pattern.permute.xlu0 0
    %84 = vperm.xlu0 %83, %v46
    %v85 = vpop.permute.xlu0 %84
    %v95 = vunpack.c.l.b16 %v31
    %v96 = vunpack.c.l.b16 %v32
    %v97 = vunpack.c.l.b16 %v33
    %v98 = vunpack.c.l.b16 %v34
    %v99 = vunpack.c.l.b16 %v35
    %v100 = vunpack.c.l.b16 %v36
    %v101 = vunpack.c.l.b16 %v37
    %v102 = vunpack.c.l.b16 %v38
    %v103 = vpack.c.b16 %v96, %v95
    %v104 = vpack.c.b16 %v98, %v97
    %v105 = vpack.c.b16 %v100, %v99
    %v106 = vpack.c.b16 %v102, %v101
    %vm107 = vcmask 261120
    %v109 = vsel %vm107, %v103, 0
    %v112 = vsel %vm107, %v104, 0
    %v115 = vsel %vm107, %v105, 0
    %v118 = vsel %vm107, %v106, 0
    %v121 = vsel %vm107, %v30, 0
    %123 = vmatprep.subr.bf16.mxu0 0
    %124 = vmatpush1.bf16.xpose.msra.mxu0 %v121
    %125 = vmatprep.subr.bf16.mxu0 0
    %126 = vmatpush1.bf16.xpose.msra.mxu0 0
    %127 = vmatprep.subr.bf16.mxu0 0
    %128 = vmatpush1.bf16.xpose.msra.mxu0 0
    %129 = vmatprep.subr.bf16.mxu0 0
    %130 = vmatpush1.bf16.xpose.msra.mxu0 0
    %131 = vmatprep.subr.bf16.mxu0 0
    %132 = vmatpush1.bf16.xpose.msra.mxu0 0
    %133 = vmatprep.subr.bf16.mxu0 0
    %134 = vmatpush1.bf16.xpose.msra.mxu0 0
    %135 = vmatprep.subr.bf16.mxu0 0
    %136 = vmatpush1.bf16.xpose.msra.mxu0 0
    %137 = vmatprep.subr.bf16.mxu0 0
    %138 = vmatpush1.bf16.xpose.msra.mxu0 0
    %139 = vmatprep.subr.bf16.mxu0 0
    %140 = vmatpush1.bf16.xpose.msra.mxu0 0
    %141 = vmatprep.subr.bf16.mxu0 0
    %142 = vmatpush1.bf16.xpose.msra.mxu0 0
    %143 = vmatprep.subr.bf16.mxu0 0
    %144 = vmatpush1.bf16.xpose.msra.mxu0 0
    %145 = vmatprep.subr.bf16.mxu0 0
    %146 = vmatpush1.bf16.xpose.msra.mxu0 0
    %147 = vmatprep.subr.bf16.mxu0 0
    %148 = vmatpush1.bf16.xpose.msra.mxu0 0
    %149 = vmatprep.subr.bf16.mxu0 0
    %150 = vmatpush1.bf16.xpose.msra.mxu0 0
    %151 = vmatprep.subr.bf16.mxu0 0
    %152 = vmatpush1.bf16.xpose.msra.mxu0 0
    %153 = vmatprep.subr.bf16.mxu0 0
    %154 = vmatpush1.bf16.xpose.msra.mxu0 0
    %155 = vmatprep.mubr.bf16.mxu0 0
    %156 = vmatmul.mubr.bf16.gmra.mrb[0].mxu0 %v109
    %v157 = vpop.f32.mrb[0].mxu0
    %v158 = vadd.f32 %v50, %v157
    %v159 = vpop.f32.mrb[0].mxu0
    %v160 = vpop.f32.mrb[0].mxu0
    %v161 = vadd.f32 %v55, %v160
    %v162 = vpop.f32.mrb[0].mxu0
    %163 = vmatprep.mubr.bf16.mxu0 0
    %164 = vmatmul.mubr.bf16.gmra.mrb[0].mxu0 %v112
    %v165 = vpop.f32.mrb[0].mxu0
    %v166 = vadd.f32 %v60, %v165
    %v167 = vpop.f32.mrb[0].mxu0
    %v168 = vpop.f32.mrb[0].mxu0
    %v169 = vadd.f32 %v65, %v168
    %v170 = vpop.f32.mrb[0].mxu0
    %171 = vmatprep.mubr.bf16.mxu0 0
    %172 = vmatmul.mubr.bf16.gmra.mrb[0].mxu0 %v115
    %v173 = vpop.f32.mrb[0].mxu0
    %v174 = vadd.f32 %v70, %v173
    %v175 = vpop.f32.mrb[0].mxu0
    %v176 = vpop.f32.mrb[0].mxu0
    %v177 = vadd.f32 %v75, %v176
    %v178 = vpop.f32.mrb[0].mxu0
    %179 = vmatprep.mubr.bf16.mxu0 0
    %180 = vmatmul.mubr.bf16.gmra.mrb[0].mxu0 %v118
    %v181 = vpop.f32.mrb[0].mxu0
    %v182 = vadd.f32 %v80, %v181
    %v183 = vpop.f32.mrb[0].mxu0
    %v184 = vpop.f32.mrb[0].mxu0
    %v185 = vadd.f32 %v85, %v184
    %v186 = vpop.f32.mrb[0].mxu0
    %187 = vdwg.mxu0
    %v188 = vmax.f32 %v158, 0.0
    %v189 = vmax.f32 %v161, 0.0
    %v190 = vmax.f32 %v166, 0.0
    %v191 = vmax.f32 %v169, 0.0
    %v192 = vmax.f32 %v174, 0.0
    %v193 = vmax.f32 %v177, 0.0
    %v194 = vmax.f32 %v182, 0.0
    %v195 = vmax.f32 %v185, 0.0
    %v196 = vld [vmem:[%s3] sm:$0xf]
    %v197 = vld [vmem:[%s3 + $0x4] sm:$0xf]
    %v198 = vld [vmem:[%s3 + $0x8] sm:$0xf]
    %v199 = vld [vmem:[%s3 + $0xc] sm:$0xf]
    %v200 = vld [vmem:[%s3 + $0x10] sm:$0xf]
    %v201 = vld [vmem:[%s3 + $0x14] sm:$0xf]
    %v202 = vld [vmem:[%s3 + $0x18] sm:$0xf]
    %v203 = vld [vmem:[%s3 + $0x1c] sm:$0xf]
    %v204 = vpack.c.bf16 %v189, %v188
    %v205 = vpack.c.bf16 %v191, %v190
    %v206 = vpack.c.bf16 %v193, %v192
    %v207 = vpack.c.bf16 %v195, %v194
    %v208 = vld [vmem:[%s4] sm:$0xff]
    %v209 = vld [vmem:[%s4 + $0x8] sm:$0xff]
    %v210 = vld [vmem:[%s4 + $0x10] sm:$0xff]
    %v211 = vld [vmem:[%s4 + $0x18] sm:$0xff]
    %v212 = vld [vmem:[%s4 + $0x20] sm:$0xff]
    %v213 = vld [vmem:[%s4 + $0x28] sm:$0xff]
    %v214 = vld [vmem:[%s4 + $0x30] sm:$0xff]
    %v215 = vld [vmem:[%s4 + $0x38] sm:$0xff]
    %217 = vset.pattern.permute.xlu0 0
    %218 = vperm.xlu0 %217, %v208
    %v219 = vpop.permute.xlu0 %218
    %222 = vset.pattern.permute.xlu0 0
    %223 = vperm.xlu0 %222, %v209
    %v224 = vpop.permute.xlu0 %223
    %227 = vset.pattern.permute.xlu0 0
    %228 = vperm.xlu0 %227, %v210
    %v229 = vpop.permute.xlu0 %228
    %232 = vset.pattern.permute.xlu0 0
    %233 = vperm.xlu0 %232, %v211
    %v234 = vpop.permute.xlu0 %233
    %237 = vset.pattern.permute.xlu0 0
    %238 = vperm.xlu0 %237, %v212
    %v239 = vpop.permute.xlu0 %238
    %242 = vset.pattern.permute.xlu0 0
    %243 = vperm.xlu0 %242, %v213
    %v244 = vpop.permute.xlu0 %243
    %247 = vset.pattern.permute.xlu0 0
    %248 = vperm.xlu0 %247, %v214
    %v249 = vpop.permute.xlu0 %248
    %252 = vset.pattern.permute.xlu0 0
    %253 = vperm.xlu0 %252, %v215
    %v254 = vpop.permute.xlu0 %253
    %v264 = vunpack.c.l.b16 %v196
    %v265 = vunpack.c.l.b16 %v197
    %v266 = vunpack.c.l.b16 %v198
    %v267 = vunpack.c.l.b16 %v199
    %v268 = vunpack.c.l.b16 %v200
    %v269 = vunpack.c.l.b16 %v201
    %v270 = vunpack.c.l.b16 %v202
    %v271 = vunpack.c.l.b16 %v203
    %v272 = vpack.c.b16 %v265, %v264
    %v273 = vpack.c.b16 %v267, %v266
    %v274 = vpack.c.b16 %v269, %v268
    %v275 = vpack.c.b16 %v271, %v270
    %vm276 = vcmask 523264
    %v278 = vsel %vm276, %v272, 0
    %v281 = vsel %vm276, %v273, 0
    %v284 = vsel %vm276, %v274, 0
    %v287 = vsel %vm276, %v275, 0
    %289 = vmatprep.subr.bf16.mxu0 0
    %290 = vmatpush1.bf16.msra.mxu0 %v204
    %291 = vmatprep.subr.bf16.mxu0 0
    %292 = vmatpush1.bf16.msra.mxu0 %v205
    %293 = vmatprep.subr.bf16.mxu0 0
    %294 = vmatpush1.bf16.msra.mxu0 %v206
    %295 = vmatprep.subr.bf16.mxu0 0
    %296 = vmatpush1.bf16.msra.mxu0 %v207
    %297 = vmatprep.subr.bf16.mxu0 0
    %298 = vmatpush1.bf16.msra.mxu0 0
    %299 = vmatprep.subr.bf16.mxu0 0
    %300 = vmatpush1.bf16.msra.mxu0 0
    %301 = vmatprep.subr.bf16.mxu0 0
    %302 = vmatpush1.bf16.msra.mxu0 0
    %303 = vmatprep.subr.bf16.mxu0 0
    %304 = vmatpush1.bf16.msra.mxu0 0
    %305 = vmatprep.subr.bf16.mxu0 0
    %306 = vmatpush1.bf16.msra.mxu0 0
    %307 = vmatprep.subr.bf16.mxu0 0
    %308 = vmatpush1.bf16.msra.mxu0 0
    %309 = vmatprep.subr.bf16.mxu0 0
    %310 = vmatpush1.bf16.msra.mxu0 0
    %311 = vmatprep.subr.bf16.mxu0 0
    %312 = vmatpush1.bf16.msra.mxu0 0
    %313 = vmatprep.subr.bf16.mxu0 0
    %314 = vmatpush1.bf16.msra.mxu0 0
    %315 = vmatprep.subr.bf16.mxu0 0
    %316 = vmatpush1.bf16.msra.mxu0 0
    %317 = vmatprep.subr.bf16.mxu0 0
    %318 = vmatpush1.bf16.msra.mxu0 0
    %319 = vmatprep.subr.bf16.mxu0 0
    %320 = vmatpush1.bf16.msra.mxu0 0
    %321 = vmatprep.mubr.bf16.mxu0 0
    %322 = vmatmul.mubr.bf16.gmra.mrb[0].mxu0 %v278
    %v323 = vpop.f32.mrb[0].mxu0
    %v324 = vadd.f32 %v219, %v323
    %v325 = vpop.f32.mrb[0].mxu0
    %v326 = vpop.f32.mrb[0].mxu0
    %v327 = vadd.f32 %v224, %v326
    %v328 = vpop.f32.mrb[0].mxu0
    %329 = vmatprep.mubr.bf16.mxu0 0
    %330 = vmatmul.mubr.bf16.gmra.mrb[0].mxu0 %v281
    %v331 = vpop.f32.mrb[0].mxu0
    %v332 = vadd.f32 %v229, %v331
    %v333 = vpop.f32.mrb[0].mxu0
    %v334 = vpop.f32.mrb[0].mxu0
    %v335 = vadd.f32 %v234, %v334
    %v336 = vpop.f32.mrb[0].mxu0
    %337 = vmatprep.mubr.bf16.mxu0 0
    %338 = vmatmul.mubr.bf16.gmra.mrb[0].mxu0 %v284
    %v339 = vpop.f32.mrb[0].mxu0
    %v340 = vadd.f32 %v239, %v339
    %v341 = vpop.f32.mrb[0].mxu0
    %v342 = vpop.f32.mrb[0].mxu0
    %v343 = vadd.f32 %v244, %v342
    %v344 = vpop.f32.mrb[0].mxu0
    %345 = vmatprep.mubr.bf16.mxu0 0
    %346 = vmatmul.mubr.bf16.gmra.mrb[0].mxu0 %v287
    %v347 = vpop.f32.mrb[0].mxu0
    %v348 = vadd.f32 %v249, %v347
    %v349 = vpop.f32.mrb[0].mxu0
    %v350 = vpop.f32.mrb[0].mxu0
    %v351 = vadd.f32 %v254, %v350
    %v352 = vpop.f32.mrb[0].mxu0
    %353 = vdwg.mxu0
    %v354 = vmax.f32 %v324, 0.0
    %v355 = vmax.f32 %v327, 0.0
    %v356 = vmax.f32 %v332, 0.0
    %v357 = vmax.f32 %v335, 0.0
    %v358 = vmax.f32 %v340, 0.0
    %v359 = vmax.f32 %v343, 0.0
    %v360 = vmax.f32 %v348, 0.0
    %v361 = vmax.f32 %v351, 0.0
    %v362 = vld [vmem:[%s5] sm:$0xff]
    %v363 = vld [vmem:[%s5 + $0x8] sm:$0xff]
    %v364 = vld [vmem:[%s5 + $0x10] sm:$0xff]
    %v365 = vld [vmem:[%s5 + $0x18] sm:$0xff]
    %v366 = vld [vmem:[%s5 + $0x20] sm:$0xff]
    %v367 = vld [vmem:[%s5 + $0x28] sm:$0xff]
    %v368 = vld [vmem:[%s5 + $0x30] sm:$0xff]
    %v369 = vld [vmem:[%s5 + $0x38] sm:$0xff]
    %371 = vset.pattern.permute.xlu0 0
    %372 = vperm.xlu0 %371, %v362
    %v373 = vpop.permute.xlu0 %372
    %376 = vset.pattern.permute.xlu0 0
    %377 = vperm.xlu0 %376, %v363
    %v378 = vpop.permute.xlu0 %377
    %381 = vset.pattern.permute.xlu0 0
    %382 = vperm.xlu0 %381, %v364
    %v383 = vpop.permute.xlu0 %382
    %386 = vset.pattern.permute.xlu0 0
    %387 = vperm.xlu0 %386, %v365
    %v388 = vpop.permute.xlu0 %387
    %391 = vset.pattern.permute.xlu0 0
    %392 = vperm.xlu0 %391, %v366
    %v393 = vpop.permute.xlu0 %392
    %396 = vset.pattern.permute.xlu0 0
    %397 = vperm.xlu0 %396, %v367
    %v398 = vpop.permute.xlu0 %397
    %401 = vset.pattern.permute.xlu0 0
    %402 = vperm.xlu0 %401, %v368
    %v403 = vpop.permute.xlu0 %402
    %406 = vset.pattern.permute.xlu0 0
    %407 = vperm.xlu0 %406, %v369
    %v408 = vpop.permute.xlu0 %407
    %v410 = vmul.f32 %v373, %v354
    %v411 = vmul.f32 %v378, %v355
    %v412 = vmul.f32 %v383, %v356
    %v413 = vmul.f32 %v388, %v357
    %v414 = vmul.f32 %v393, %v358
    %v415 = vmul.f32 %v398, %v359
    %v416 = vmul.f32 %v403, %v360
    %v417 = vmul.f32 %v408, %v361
    %vm418 = vcmask 64512
    %v419 = vsel %vm418, %v410, 0.0
    %v420 = vsel %vm418, %v411, 0.0
    %v421 = vadd.f32 %v419, %v420
    %v422 = vsel %vm418, %v412, 0.0
    %v423 = vadd.f32 %v421, %v422
    %v424 = vsel %vm418, %v413, 0.0
    %v425 = vadd.f32 %v423, %v424
    %v426 = vsel %vm418, %v414, 0.0
    %v427 = vadd.f32 %v425, %v426
    %v428 = vsel %vm418, %v415, 0.0
    %v429 = vadd.f32 %v427, %v428
    %v430 = vsel %vm418, %v416, 0.0
    %v431 = vadd.f32 %v429, %v430
    %v432 = vsel %vm418, %v417, 0.0
    %v433 = vadd.f32 %v431, %v432
    %v434 = vrot.slane %v433, 4
    %v435 = vadd.f32 %v433, %v434
    %v436 = vrot.slane %v435, 2
    %v437 = vadd.f32 %v435, %v436
    %v438 = vrot.slane %v437, 1
    %v439 = vadd.f32 %v437, %v438
    %v440 = vld [vmem:[#allocation2] sm:$0x1]
    %442 = vset.pattern.permute.xlu0 0
    %443 = vperm.xlu0 %442, %v440
    %v444 = vpop.permute.xlu0 %443
    %v446 = vlaneseq
    %v447 = vshrl.u32 %v446, 7
    %v448 = vsub.s32 0, %v447
    %v449 = vrot.slane %v444, %v448
    %v450 = vadd.f32 %v439, %v449
    %vm451 = vcmask 57344
    %452 = vst.msk [vmem:[#allocation3] sm:$0x1] %vm451, %v450
    // Predicated region
    $region30: #{tpu_custom_call.1} parent=1 // pred_check
      _
    $region31: #{tpu_custom_call.1} parent=1 // pred_check_branch
      %454 = sbr.rel (0) target = $region33
    $region32: #{tpu_custom_call.1} parent=1 // pred_region
      %s456 = ssub.s32 16, 16
      %457 = vsyncadd [#allocation4], %s456
      %s459 = sshll.u32 [#allocation3], 4
      %s460 = int_to_ptr.vmem [resolvable:$true] %s459
      %462 = dma.vmem_to_hbm [thread:$0]  %s460, 16, %s7, [#allocation4]
    $region33: #{tpu_custom_call.1} parent=1 // pred_fallthru
      _
    // Predicated region
    $region34: #{tpu_custom_call.1} parent=1 // pred_check
      _
    $region35: #{tpu_custom_call.1} parent=1 // pred_check_branch
      %464 = sbr.rel (0) target = $region37
    $region36: #{tpu_custom_call.1} parent=1 // pred_region
      %465 = dma.done [#allocation4], 16
    $region37: #{tpu_custom_call.1} parent=1 // pred_fallthru
      _
    %466 = vsyncpa [#allocation4], 1

</llo_original>
